<compile_context>
chip_gen: v7x
topology: tpu7x:2x2x1
jax: 0.10.0
libtpu: 0.0.40
codegen_flags: <defaults>
</compile_context>

<pallas_src>
import functools

import numpy as np
import jax
import jax.numpy as jnp
from jax.experimental import pallas as pl
from jax.experimental.pallas import tpu as pltpu


# ----------------------------- schedule (glue) ------------------------------
def make_beta_schedule_quad(n_timestep, beta_0, beta_T):
    betas = np.linspace(beta_0 ** 0.5, beta_T ** 0.5, n_timestep, dtype=np.float64) ** 2
    return betas


# ------------------------------ Pallas kernels ------------------------------
def _vpu_kernel(a_ref, s_ref, m_ref,          # [B] f32 in SMEM
                x0_ref, nz_ref, cd_ref,        # [C, HW_TILE] VMEM blocks
                w_ref,                         # [2C, C, 1] resident weight columns
                tb_ref,                        # [C, 1] per-batch time bias
                loss_ref,                      # out [C, HW_TILE]
                *, C):
    """Small-C path: 1x1 conv lowered as 2C unrolled broadcast-FMAs on the VPU."""
    b = pl.program_id(0)
    a = a_ref[b]
    s = s_ref[b]
    m = m_ref[b]

    x0 = x0_ref[...]
    nz = nz_ref[...]
    cd = cd_ref[...]

    # q(x_t | x_0) forward diffusion step (per-batch scalars from SMEM).
    x_t = a * x0 + s * nz
    # conditional drop / replacement: condit[b] <- x_t[b] on masked rows.
    cond = cd + m * (x_t - cd)

    hw = x0.shape[-1]
    acc = jnp.zeros((C, hw), jnp.float32)
    for k in range(C):  # unrolled at trace time; rank-1 broadcast FMAs (VPU)
        acc = acc + w_ref[k] * cond[k:k + 1, :] + w_ref[C + k] * x_t[k:k + 1, :]
    pred = acc + tb_ref[...]                 # [C,1] broadcasts along the HW lanes

    # F.mse_loss(..., reduction='none') fused into the lane-dense store.
    loss_ref[...] = (pred - nz) ** 2


def _mxu_kernel(a_ref, s_ref, m_ref,
                x0_ref, nz_ref, cd_ref,
                w_ref,                         # [C, 2C] resident weight
                tb_ref,                        # [C, 1]
                loss_ref,
                stk_ref,                       # VMEM scratch [2C, HW_TILE]
                *, C):
    """Large-C path: single fused K=2C MXU contraction over [cond; x_t]."""
    b = pl.program_id(0)
    a = a_ref[b]
    s = s_ref[b]
    m = m_ref[b]

    x0 = x0_ref[...]
    nz = nz_ref[...]
    cd = cd_ref[...]

    x_t = a * x0 + s * nz
    cond = cd + m * (x_t - cd)

    stk_ref[0:C, :] = cond
    stk_ref[C:2 * C, :] = x_t
    pred = jnp.dot(w_ref[...], stk_ref[...],
                   preferred_element_type=jnp.float32) + tb_ref[...]

    loss_ref[...] = (pred - nz) ** 2


# ------------------------------ kernel wrapper -------------------------------
def _pick_hw_tile(hw, target=2048):
    """Largest 128-multiple divisor of hw that is <= target (or full hw)."""
    if hw <= target:
        return hw
    tile = (target // 128) * 128
    while tile >= 128:
        if hw % tile == 0:
            return tile
        tile -= 128
    return hw


def trainer_forward(a_t, s_t, mask_f, x0, noise, condit, w, temb):
    """
    a_t, s_t, mask_f : [B] f32 per-batch scalars
    x0, noise, condit: [B, C, HW] f32 (native NCHW with H*W folded — no transpose)
    w                : [C, 2C] f32 surrogate 1x1-conv weight ([cond | x_t] channels)
    temb             : [B, C] f32 per-timestep channel bias (gathered per batch)
    returns          : [B, C, HW] f32 elementwise mse loss
    """
    B, C, HW = x0.shape
    hw_tile = _pick_hw_tile(HW)
    n_hw = HW // hw_tile

    use_mxu = (C >= 16) and (C % 8 == 0)

    smem_spec = pl.BlockSpec(memory_space=pltpu.MemorySpace.SMEM)
    act_spec = pl.BlockSpec((pl.Squeezed(), C, hw_tile), lambda b, j: (b, 0, j))
    tb_spec = pl.BlockSpec((pl.Squeezed(), C, 1), lambda b, j: (b, 0, 0))

    temb3 = temb[:, :, None]                          # [B, C, 1] (tiny)

    if use_mxu:
        kernel = functools.partial(_mxu_kernel, C=C)
        w_arr = w                                      # [C, 2C]
        w_spec = pl.BlockSpec((C, 2 * C), lambda b, j: (0, 0))     # resident
        scratch = [pltpu.VMEM((2 * C, hw_tile), jnp.float32)]
    else:
        kernel = functools.partial(_vpu_kernel, C=C)
        w_arr = jnp.transpose(w)[:, :, None]           # [2C, C, 1], O(C^2) bytes
        w_spec = pl.BlockSpec((2 * C, C, 1), lambda b, j: (0, 0, 0))  # resident
        scratch = []

    # VMEM budget: double-buffered streamed tiles (x0, noise, condit, loss)
    # plus resident weights / temb / optional stacking scratch + headroom.
    tile_bytes = C * hw_tile * 4
    vmem_need = 2 * 4 * tile_bytes
    vmem_need += 2 * C * 2 * C * 4
    if use_mxu:
        vmem_need += 2 * C * hw_tile * 4
    vmem_need += 1 << 20
    vmem_limit = int(min(max(vmem_need, 16 << 20), 64 << 20))

    return pl.pallas_call(
        kernel,
        out_shape=jax.ShapeDtypeStruct((B, C, HW), jnp.float32),
        grid=(B, n_hw),
        in_specs=[smem_spec, smem_spec, smem_spec,
                  act_spec, act_spec, act_spec,
                  w_spec, tb_spec],
        out_specs=act_spec,
        scratch_shapes=scratch,
        compiler_params=pltpu.CompilerParams(
            dimension_semantics=("parallel", "parallel"),
            vmem_limit_bytes=vmem_limit),
    )(a_t, s_t, mask_f, x0, noise, condit, w_arr, temb3)


# ------------------------------- driver glue --------------------------------
class GaussianDiffusionTrainer:
    def __init__(self, beta_1, beta_T, T, uncon_ratio, channels, key):
        self.T = T
        self.ratio = uncon_ratio
        self.C = channels

        betas = make_beta_schedule_quad(T, beta_1, beta_T)
        alphas = 1.0 - betas
        alphas_bar = np.cumprod(alphas, axis=0)
        self.sqrt_alphas_bar = jnp.asarray(np.sqrt(alphas_bar), dtype=jnp.float32)
        self.sqrt_one_minus_alphas_bar = jnp.asarray(
            np.sqrt(1.0 - alphas_bar), dtype=jnp.float32)

        kw, kt = jax.random.split(key)
        # deterministic surrogate-model parameters (stand-in for the UNet)
        self.w = jax.random.normal(kw, (channels, 2 * channels), jnp.float32) * 0.1
        self.temb_table = jax.random.normal(kt, (T, channels), jnp.float32) * 0.01

    def forward(self, condit, x_0, key):
        B, C, H, W = x_0.shape
        HW = H * W
        kt, kn, kc, kp = jax.random.split(key, 4)

        # t ~ Uniform{0, ..., T-1}; gather schedule values
        t = jax.random.randint(kt, (B,), 0, self.T)
        a_t = self.sqrt_alphas_bar[t]                       # [B]
        s_t = self.sqrt_one_minus_alphas_bar[t]             # [B]

        # noise ~ N(0, 1)
        noise = jax.random.normal(kn, x_0.shape, jnp.float32)

        # conditional drop: random subset of Binomial(B, ratio) rows gets condit <- x_t
        # (mirrors np.random.choice count + torch.randperm subset selection)
        draws = jax.random.bernoulli(kc, self.ratio, (B,))
        n_sample = jnp.sum(draws.astype(jnp.int32))
        scores = jax.random.uniform(kp, (B,))
        ranks = jnp.argsort(jnp.argsort(scores))
        mask_f = (ranks < n_sample).astype(jnp.float32)     # [B]

        # per-batch per-channel time bias of the surrogate model: small [B, C]
        temb = self.temb_table[t]

        # free reshapes only — no transposes, no broadcast materialisation
        x0_l = x_0.reshape(B, C, HW)
        nz_l = noise.reshape(B, C, HW)
        cd_l = condit.reshape(B, C, HW)

        loss = trainer_forward(a_t, s_t, mask_f, x0_l, nz_l, cd_l, self.w, temb)
        loss = loss.reshape(B, C, H, W)
        return loss, (a_t, s_t, mask_f, noise, temb)


def _reference(trainer, condit, x_0, a_t, s_t, mask_f, noise, temb):
    B, C, H, W = x_0.shape
    a = a_t.reshape(B, 1, 1, 1)
    s = s_t.reshape(B, 1, 1, 1)
    m = mask_f.reshape(B, 1, 1, 1)
    x_t = a * x_0 + s * noise
    cond = m * x_t + (1.0 - m) * condit
    inp = jnp.concatenate([cond, x_t], axis=1)              # [B, 2C, H, W]
    pred = jnp.einsum('co,bohw->bchw', trainer.w, inp,
                      precision=jax.lax.Precision.HIGHEST) + temb.reshape(B, C, 1, 1)
    return (pred - noise) ** 2


if __name__ == "__main__":
    B, C, H, W = 2, 4, 16, 16
    T = 100
    key = jax.random.PRNGKey(0)
    k_init, k_x, k_c, k_fwd = jax.random.split(key, 4)

    trainer = GaussianDiffusionTrainer(
        beta_1=1e-4, beta_T=0.02, T=T, uncon_ratio=0.5, channels=C, key=k_init)

    x_0 = jax.random.normal(k_x, (B, C, H, W), jnp.float32)
    condit = jax.random.normal(k_c, (B, C, H, W), jnp.float32)

    loss, aux = trainer.forward(condit, x_0, k_fwd)
    loss = jax.block_until_ready(loss)

    ref = _reference(trainer, condit, x_0, *aux)
    np.testing.assert_allclose(np.asarray(loss), np.asarray(ref),
                               rtol=1e-5, atol=1e-5)
    print("KERNEL_OK")
</pallas_src>

<mosaic_0001>
module attributes {stable_mosaic.version = 11 : i64} {
  func.func @_vpu_kernel(%arg0: i32, %arg1: i32, %arg2: memref<2xf32, #tpu.memory_space<smem>>, %arg3: memref<2xf32, #tpu.memory_space<smem>>, %arg4: memref<2xf32, #tpu.memory_space<smem>>, %arg5: memref<1x4x256xf32, #tpu.memory_space<vmem>>, %arg6: memref<1x4x256xf32, #tpu.memory_space<vmem>>, %arg7: memref<1x4x256xf32, #tpu.memory_space<vmem>>, %arg8: memref<8x4x1xf32, #tpu.memory_space<vmem>>, %arg9: memref<1x4x1xf32, #tpu.memory_space<vmem>>, %arg10: memref<1x4x256xf32, #tpu.memory_space<vmem>>) attributes {dimension_semantics = [#tpu.dimension_semantics<parallel>, #tpu.dimension_semantics<parallel>], iteration_bounds = array<i64: 2, 1>, scalar_prefetch = 0 : i64, scratch_operands = 0 : i64, tpu.core_type = #tpu.core_type<tc>, window_params = [{transform_indices = @transform_0, window_bounds = array<i64: 2>}, {transform_indices = @transform_1, window_bounds = array<i64: 2>}, {transform_indices = @transform_2, window_bounds = array<i64: 2>}, {transform_indices = @transform_3, window_bounds = array<i64: 1, 4, 256>}, {transform_indices = @transform_4, window_bounds = array<i64: 1, 4, 256>}, {transform_indices = @transform_5, window_bounds = array<i64: 1, 4, 256>}, {pipeline_mode = #tpu.pipeline_mode<synchronous>, transform_indices = @transform_6, window_bounds = array<i64: 8, 4, 1>}, {transform_indices = @transform_7, window_bounds = array<i64: 1, 4, 1>}, {transform_indices = @transform_8, window_bounds = array<i64: 1, 4, 256>}]} {
    %0 = arith.index_cast %arg0 : i32 to index
    %1 = memref.load %arg2[%0] : memref<2xf32, #tpu.memory_space<smem>>
    %2 = arith.index_cast %arg0 : i32 to index
    %3 = memref.load %arg3[%2] : memref<2xf32, #tpu.memory_space<smem>>
    %4 = arith.index_cast %arg0 : i32 to index
    %5 = memref.load %arg4[%4] : memref<2xf32, #tpu.memory_space<smem>>
    %c0 = arith.constant 0 : index
    %c0_0 = arith.constant 0 : index
    %c0_1 = arith.constant 0 : index
    %6 = vector.load %arg5[%c0, %c0_0, %c0_1] : memref<1x4x256xf32, #tpu.memory_space<vmem>>, vector<1x4x256xf32>
    %7 = vector.shape_cast %6 : vector<1x4x256xf32> to vector<4x256xf32>
    %c0_2 = arith.constant 0 : index
    %c0_3 = arith.constant 0 : index
    %c0_4 = arith.constant 0 : index
    %8 = vector.load %arg6[%c0_2, %c0_3, %c0_4] : memref<1x4x256xf32, #tpu.memory_space<vmem>>, vector<1x4x256xf32>
    %9 = vector.shape_cast %8 : vector<1x4x256xf32> to vector<4x256xf32>
    %c0_5 = arith.constant 0 : index
    %c0_6 = arith.constant 0 : index
    %c0_7 = arith.constant 0 : index
    %10 = vector.load %arg7[%c0_5, %c0_6, %c0_7] : memref<1x4x256xf32, #tpu.memory_space<vmem>>, vector<1x4x256xf32>
    %11 = vector.shape_cast %10 : vector<1x4x256xf32> to vector<4x256xf32>
    %12 = vector.broadcast %1 : f32 to vector<4x256xf32>
    %13 = arith.mulf %12, %7 : vector<4x256xf32>
    %14 = vector.broadcast %3 : f32 to vector<4x256xf32>
    %15 = arith.mulf %14, %9 : vector<4x256xf32>
    %16 = arith.addf %13, %15 : vector<4x256xf32>
    %17 = arith.subf %16, %11 : vector<4x256xf32>
    %18 = vector.broadcast %5 : f32 to vector<4x256xf32>
    %19 = arith.mulf %18, %17 : vector<4x256xf32>
    %20 = arith.addf %11, %19 : vector<4x256xf32>
    %cst = arith.constant 0.000000e+00 : f32
    %21 = vector.broadcast %cst : f32 to vector<4x256xf32>
    %c0_8 = arith.constant 0 : index
    %c0_9 = arith.constant 0 : index
    %c0_10 = arith.constant 0 : index
    %22 = vector.load %arg8[%c0_8, %c0_9, %c0_10] : memref<8x4x1xf32, #tpu.memory_space<vmem>>, vector<1x4x1xf32>
    %23 = vector.shape_cast %22 : vector<1x4x1xf32> to vector<4x1xf32>
    %24 = vector.extract_strided_slice %20 {offsets = [0, 0], sizes = [1, 256], strides = [1, 1]} : vector<4x256xf32> to vector<1x256xf32>
    %25 = vector.broadcast %23 : vector<4x1xf32> to vector<4x256xf32>
    %26 = vector.broadcast %24 : vector<1x256xf32> to vector<4x256xf32>
    %27 = arith.mulf %25, %26 : vector<4x256xf32>
    %28 = arith.addf %21, %27 : vector<4x256xf32>
    %c4 = arith.constant 4 : index
    %c0_11 = arith.constant 0 : index
    %c0_12 = arith.constant 0 : index
    %29 = vector.load %arg8[%c4, %c0_11, %c0_12] : memref<8x4x1xf32, #tpu.memory_space<vmem>>, vector<1x4x1xf32>
    %30 = vector.shape_cast %29 : vector<1x4x1xf32> to vector<4x1xf32>
    %31 = vector.extract_strided_slice %16 {offsets = [0, 0], sizes = [1, 256], strides = [1, 1]} : vector<4x256xf32> to vector<1x256xf32>
    %32 = vector.broadcast %30 : vector<4x1xf32> to vector<4x256xf32>
    %33 = vector.broadcast %31 : vector<1x256xf32> to vector<4x256xf32>
    %34 = arith.mulf %32, %33 : vector<4x256xf32>
    %35 = arith.addf %28, %34 : vector<4x256xf32>
    %c1 = arith.constant 1 : index
    %c0_13 = arith.constant 0 : index
    %c0_14 = arith.constant 0 : index
    %36 = vector.load %arg8[%c1, %c0_13, %c0_14] : memref<8x4x1xf32, #tpu.memory_space<vmem>>, vector<1x4x1xf32>
    %37 = vector.shape_cast %36 : vector<1x4x1xf32> to vector<4x1xf32>
    %38 = vector.extract_strided_slice %20 {offsets = [1, 0], sizes = [1, 256], strides = [1, 1]} : vector<4x256xf32> to vector<1x256xf32>
    %39 = vector.broadcast %37 : vector<4x1xf32> to vector<4x256xf32>
    %40 = vector.broadcast %38 : vector<1x256xf32> to vector<4x256xf32>
    %41 = arith.mulf %39, %40 : vector<4x256xf32>
    %42 = arith.addf %35, %41 : vector<4x256xf32>
    %c5 = arith.constant 5 : index
    %c0_15 = arith.constant 0 : index
    %c0_16 = arith.constant 0 : index
    %43 = vector.load %arg8[%c5, %c0_15, %c0_16] : memref<8x4x1xf32, #tpu.memory_space<vmem>>, vector<1x4x1xf32>
    %44 = vector.shape_cast %43 : vector<1x4x1xf32> to vector<4x1xf32>
    %45 = vector.extract_strided_slice %16 {offsets = [1, 0], sizes = [1, 256], strides = [1, 1]} : vector<4x256xf32> to vector<1x256xf32>
    %46 = vector.broadcast %44 : vector<4x1xf32> to vector<4x256xf32>
    %47 = vector.broadcast %45 : vector<1x256xf32> to vector<4x256xf32>
    %48 = arith.mulf %46, %47 : vector<4x256xf32>
    %49 = arith.addf %42, %48 : vector<4x256xf32>
    %c2 = arith.constant 2 : index
    %c0_17 = arith.constant 0 : index
    %c0_18 = arith.constant 0 : index
    %50 = vector.load %arg8[%c2, %c0_17, %c0_18] : memref<8x4x1xf32, #tpu.memory_space<vmem>>, vector<1x4x1xf32>
    %51 = vector.shape_cast %50 : vector<1x4x1xf32> to vector<4x1xf32>
    %52 = vector.extract_strided_slice %20 {offsets = [2, 0], sizes = [1, 256], strides = [1, 1]} : vector<4x256xf32> to vector<1x256xf32>
    %53 = vector.broadcast %51 : vector<4x1xf32> to vector<4x256xf32>
    %54 = vector.broadcast %52 : vector<1x256xf32> to vector<4x256xf32>
    %55 = arith.mulf %53, %54 : vector<4x256xf32>
    %56 = arith.addf %49, %55 : vector<4x256xf32>
    %c6 = arith.constant 6 : index
    %c0_19 = arith.constant 0 : index
    %c0_20 = arith.constant 0 : index
    %57 = vector.load %arg8[%c6, %c0_19, %c0_20] : memref<8x4x1xf32, #tpu.memory_space<vmem>>, vector<1x4x1xf32>
    %58 = vector.shape_cast %57 : vector<1x4x1xf32> to vector<4x1xf32>
    %59 = vector.extract_strided_slice %16 {offsets = [2, 0], sizes = [1, 256], strides = [1, 1]} : vector<4x256xf32> to vector<1x256xf32>
    %60 = vector.broadcast %58 : vector<4x1xf32> to vector<4x256xf32>
    %61 = vector.broadcast %59 : vector<1x256xf32> to vector<4x256xf32>
    %62 = arith.mulf %60, %61 : vector<4x256xf32>
    %63 = arith.addf %56, %62 : vector<4x256xf32>
    %c3 = arith.constant 3 : index
    %c0_21 = arith.constant 0 : index
    %c0_22 = arith.constant 0 : index
    %64 = vector.load %arg8[%c3, %c0_21, %c0_22] : memref<8x4x1xf32, #tpu.memory_space<vmem>>, vector<1x4x1xf32>
    %65 = vector.shape_cast %64 : vector<1x4x1xf32> to vector<4x1xf32>
    %66 = vector.extract_strided_slice %20 {offsets = [3, 0], sizes = [1, 256], strides = [1, 1]} : vector<4x256xf32> to vector<1x256xf32>
    %67 = vector.broadcast %65 : vector<4x1xf32> to vector<4x256xf32>
    %68 = vector.broadcast %66 : vector<1x256xf32> to vector<4x256xf32>
    %69 = arith.mulf %67, %68 : vector<4x256xf32>
    %70 = arith.addf %63, %69 : vector<4x256xf32>
    %c7 = arith.constant 7 : index
    %c0_23 = arith.constant 0 : index
    %c0_24 = arith.constant 0 : index
    %71 = vector.load %arg8[%c7, %c0_23, %c0_24] : memref<8x4x1xf32, #tpu.memory_space<vmem>>, vector<1x4x1xf32>
    %72 = vector.shape_cast %71 : vector<1x4x1xf32> to vector<4x1xf32>
    %73 = vector.extract_strided_slice %16 {offsets = [3, 0], sizes = [1, 256], strides = [1, 1]} : vector<4x256xf32> to vector<1x256xf32>
    %74 = vector.broadcast %72 : vector<4x1xf32> to vector<4x256xf32>
    %75 = vector.broadcast %73 : vector<1x256xf32> to vector<4x256xf32>
    %76 = arith.mulf %74, %75 : vector<4x256xf32>
    %77 = arith.addf %70, %76 : vector<4x256xf32>
    %c0_25 = arith.constant 0 : index
    %c0_26 = arith.constant 0 : index
    %c0_27 = arith.constant 0 : index
    %78 = vector.load %arg9[%c0_25, %c0_26, %c0_27] : memref<1x4x1xf32, #tpu.memory_space<vmem>>, vector<1x4x1xf32>
    %79 = vector.shape_cast %78 : vector<1x4x1xf32> to vector<4x1xf32>
    %80 = vector.broadcast %79 : vector<4x1xf32> to vector<4x256xf32>
    %81 = arith.addf %77, %80 : vector<4x256xf32>
    %82 = arith.subf %81, %9 : vector<4x256xf32>
    %83 = arith.mulf %82, %82 : vector<4x256xf32>
    %c0_28 = arith.constant 0 : index
    %c0_29 = arith.constant 0 : index
    %c0_30 = arith.constant 0 : index
    %84 = vector.load %arg10[%c0_28, %c0_29, %c0_30] : memref<1x4x256xf32, #tpu.memory_space<vmem>>, vector<1x4x256xf32>
    %85 = vector.shape_cast %84 : vector<1x4x256xf32> to vector<4x256xf32>
    %86 = vector.shape_cast %83 : vector<4x256xf32> to vector<1x4x256xf32>
    tpu.vector_store %arg10[%c0_28, %c0_29, %c0_30], %86 {strides = array<i32>} : memref<1x4x256xf32, #tpu.memory_space<vmem>>, vector<1x4x256xf32>,
    return
  }
  func.func @transform_0(%arg0: i32, %arg1: i32) -> i32 {
    %c0_i32 = arith.constant 0 : i32
    %c0_i32_0 = arith.constant 0 : i32
    return %c0_i32 : i32
  }
  func.func @transform_1(%arg0: i32, %arg1: i32) -> i32 {
    %c0_i32 = arith.constant 0 : i32
    %c0_i32_0 = arith.constant 0 : i32
    return %c0_i32 : i32
  }
  func.func @transform_2(%arg0: i32, %arg1: i32) -> i32 {
    %c0_i32 = arith.constant 0 : i32
    %c0_i32_0 = arith.constant 0 : i32
    return %c0_i32 : i32
  }
  func.func @transform_3(%arg0: i32, %arg1: i32) -> (i32, i32, i32) {
    %c0_i32 = arith.constant 0 : i32
    %c0_i32_0 = arith.constant 0 : i32
    return %arg0, %c0_i32, %arg1 : i32, i32, i32
  }
  func.func @transform_4(%arg0: i32, %arg1: i32) -> (i32, i32, i32) {
    %c0_i32 = arith.constant 0 : i32
    %c0_i32_0 = arith.constant 0 : i32
    return %arg0, %c0_i32, %arg1 : i32, i32, i32
  }
  func.func @transform_5(%arg0: i32, %arg1: i32) -> (i32, i32, i32) {
    %c0_i32 = arith.constant 0 : i32
    %c0_i32_0 = arith.constant 0 : i32
    return %arg0, %c0_i32, %arg1 : i32, i32, i32
  }
  func.func @transform_6(%arg0: i32, %arg1: i32) -> (i32, i32, i32) {
    %c0_i32 = arith.constant 0 : i32
    %c0_i32_0 = arith.constant 0 : i32
    %c0_i32_1 = arith.constant 0 : i32
    %c0_i32_2 = arith.constant 0 : i32
    return %c0_i32, %c0_i32_0, %c0_i32_1 : i32, i32, i32
  }
  func.func @transform_7(%arg0: i32, %arg1: i32) -> (i32, i32, i32) {
    %c0_i32 = arith.constant 0 : i32
    %c0_i32_0 = arith.constant 0 : i32
    %c0_i32_1 = arith.constant 0 : i32
    return %arg0, %c0_i32, %c0_i32_0 : i32, i32, i32
  }
  func.func @transform_8(%arg0: i32, %arg1: i32) -> (i32, i32, i32) {
    %c0_i32 = arith.constant 0 : i32
    %c0_i32_0 = arith.constant 0 : i32
    return %arg0, %c0_i32, %arg1 : i32, i32, i32
  }
}

</mosaic_0001>

<llo_original>
// kernel: tpu_custom_call.1
$region0: #{tpu_custom_call.1}
  #allocation0 [shape = 'u32[]', space=smem, size = 0x4, offset = 0x4, fixed_abs, tag = 'smem constant byte address 0x4 - core index']
  #allocation1 [shape = 'u32[144,128]{1,0:T(1,128)}', space=vmem, size = 0x12000, scoped, tag = 'internal scratch']
  %s0 = inlined_call_operand.vmem [shape: f32[2], index: 0, kind: input, shape index: {}]
  %s1 = inlined_call_operand.hbm [shape: f32[2], index: 1, kind: input, shape index: {}]
  %s2 = inlined_call_operand.hbm [shape: f32[2], index: 2, kind: input, shape index: {}]
  %s3 = inlined_call_operand.vmem [shape: f32[2,4,256], index: 3, kind: input, shape index: {}]
  %s4 = inlined_call_operand.vmem [shape: f32[2,4,256], index: 4, kind: input, shape index: {}]
  %s5 = inlined_call_operand.vmem [shape: f32[2,4,256], index: 5, kind: input, shape index: {}]
  %s6 = inlined_call_operand.vmem [shape: f32[8,4,1], index: 6, kind: input, shape index: {}]
  %s7 = inlined_call_operand.vmem [shape: f32[2,4,1], index: 7, kind: input, shape index: {}]
  %s8 = inlined_call_operand.hbm [shape: f32[2,4,256], index: 8, kind: output, shape index: {}]
  %s9 = sld [smem:[#allocation0]]
  $region77: #{tpu_custom_call.1} parent=0
    _
  %s11 = ssub.s32 1, %s9
  %s12 = scalar_select 0, %s11, %s9
  $region1: #{tpu_custom_call.1} parent=0
    #allocation2 [shape = 'u8[512]{0}', space=smem, size = 0x200, scoped, tag = 'input window, operand 0, single buffered']
    #allocation3 [shape = 's32[2]{0}', space=sflag, size = 0x8, scoped, tag = 'scoped memory for tpu_custom_call.1']
    #allocation4 [shape = 's32[2]{0}', space=sflag, size = 0x8, scoped, tag = 'scoped memory for tpu_custom_call.1']
    #allocation5 [shape = 's32[2]{0}', space=sflag, size = 0x8, scoped, tag = 'scoped memory for tpu_custom_call.1']
    #allocation6 [shape = 'u8[512]{0}', space=smem, size = 0x200, scoped, tag = 'input window, operand 1, single buffered']
    #allocation7 [shape = 'u8[512]{0}', space=smem, size = 0x200, scoped, tag = 'input window, operand 2, single buffered']
    #allocation8 [shape = 's32[1]{0}', space=sflag, size = 0x4, scoped, tag = 'scoped memory for tpu_custom_call.1']
    #allocation9 [shape = 'u8[8192]{0}', space=vmem, size = 0x2000, scoped, tag = 'output window, operand 0']
    %13 = vsyncpa [#allocation5], 0
    %14 = vsyncpa [#allocation4], 0
    %15 = vsyncpa [#allocation8], 0
    %16 = vsyncpa [#allocation3], 0
    %s17 = scalar_lea.sflag [#allocation3], 1
    %18 = vsyncpa %s17, 0
    loop: start=0, step=1, limit=4
    $region2: #{tpu_custom_call.1} parent=1 // loop_pre_header
      _
    $region3: #{tpu_custom_call.1} parent=1 // loop_header
      %s20 = sphi 0, %s24
      %p21 = scmp.ge.s32.totalorder %s20, 4
      %s27 = sphi 0, %s39
      %s28 = sphi 0, %s35
      %s29 = sphi 0, %s27
      %s30 = sphi 0, %s28
      %s31 = sphi 0, %s29
      %s32 = sphi 0, %s30
      %s40 = sphi 0, %s40
      %s42 = sphi 0, %s40
      %s43 = sphi 0, %s42
      %s57 = sphi 0, %s43
      %s61 = sphi 0, %s61
      %s63 = sphi 0, %s61
      %s64 = sphi 0, %s63
      %s78 = sphi 0, %s64
      %s82 = sphi 0, %s82
      %s84 = sphi 0, %s82
      %s85 = sphi 0, %s84
      %s99 = sphi 0, %s85
      %s107 = sphi 0, %s109
      %s110 = sphi 0, %s107
      %s111 = sphi 0, %s110
      %s127 = sphi 0, %s111
      %s135 = sphi 0, %s137
      %s138 = sphi 0, %s135
      %s139 = sphi 0, %s138
      %s155 = sphi 0, %s139
      %s163 = sphi 0, %s165
      %s166 = sphi 0, %s163
      %s167 = sphi 0, %s166
      %s183 = sphi 0, %s167
      %s187 = sphi 0, %s187
      %s189 = sphi 0, %s187
      %s190 = sphi 0, %s189
      %s204 = sphi 0, %s190
      %s210 = sphi 0, %s212
      %s213 = sphi 0, %s210
      %s214 = sphi 0, %s213
      %s230 = sphi 0, %s214
      %s238 = sphi 0, %s240
      %s241 = sphi 0, %s238
      %s242 = sphi 0, %s241
      %s258 = sphi 0, %s242
    $region4: #{tpu_custom_call.1} parent=1 // loop_header_branch
      %23 = sbr.rel (%p21) target = $region8
    $region5: #{tpu_custom_call.1} parent=1 // loop_body
      %s25 = ssub.s32 %s20, 1
      %s26 = ssub.s32 %s20, 2
      %s33 = sadd.s32 1, %s28
      %p34 = scmp.ge.s32.totalorder %s33, 1
      %s35 = scalar_select %p34, 0, %s33
      %s36 = sadd.s32 1, %s27
      %s37 = scalar_select %p34, %s36, %s27
      %p38 = scmp.ge.s32.totalorder %s37, 2
      %s39 = scalar_select %p38, 0, %s37
      %s41 = sadd.s32 %s40, 1
      %p44 = scmp.eq.s32.totalorder %s20, 1
      %p45 = scmp.ne.s32.totalorder %s40, %s42
      %p46 = scmp.eq.s32.totalorder %s20, 0
      %p47 = por %p45, %p46
      %p48 = scmp.ne.s32.totalorder %s40, %s42
      %p49 = scmp.eq.s32.totalorder %s25, 1
      %p50 = por %p48, %p49
      %p51 = scmp.ne.s32.totalorder %s42, %s43
      %p52 = scmp.eq.s32.totalorder %s25, 0
      %p53 = por %p51, %p52
      %p54 = scmp.ne.s32.totalorder %s42, %s43
      %p55 = scmp.eq.s32.totalorder %s26, 1
      %p56 = por %p54, %p55
      %p58 = scmp.ne.s32.totalorder %s43, %s57
      %p59 = scmp.eq.s32.totalorder %s26, 0
      %p60 = por %p58, %p59
      %s62 = sadd.s32 %s61, 1
      %p65 = scmp.eq.s32.totalorder %s20, 1
      %p66 = scmp.ne.s32.totalorder %s61, %s63
      %p67 = scmp.eq.s32.totalorder %s20, 0
      %p68 = por %p66, %p67
      %p69 = scmp.ne.s32.totalorder %s61, %s63
      %p70 = scmp.eq.s32.totalorder %s25, 1
      %p71 = por %p69, %p70
      %p72 = scmp.ne.s32.totalorder %s63, %s64
      %p73 = scmp.eq.s32.totalorder %s25, 0
      %p74 = por %p72, %p73
      %p75 = scmp.ne.s32.totalorder %s63, %s64
      %p76 = scmp.eq.s32.totalorder %s26, 1
      %p77 = por %p75, %p76
      %p79 = scmp.ne.s32.totalorder %s64, %s78
      %p80 = scmp.eq.s32.totalorder %s26, 0
      %p81 = por %p79, %p80
      %s83 = sadd.s32 %s82, 1
      %p86 = scmp.eq.s32.totalorder %s20, 1
      %p87 = scmp.ne.s32.totalorder %s82, %s84
      %p88 = scmp.eq.s32.totalorder %s20, 0
      %p89 = por %p87, %p88
      %p90 = scmp.ne.s32.totalorder %s82, %s84
      %p91 = scmp.eq.s32.totalorder %s25, 1
      %p92 = por %p90, %p91
      %p93 = scmp.ne.s32.totalorder %s84, %s85
      %p94 = scmp.eq.s32.totalorder %s25, 0
      %p95 = por %p93, %p94
      %p96 = scmp.ne.s32.totalorder %s84, %s85
      %p97 = scmp.eq.s32.totalorder %s26, 1
      %p98 = por %p96, %p97
      %p100 = scmp.ne.s32.totalorder %s85, %s99
      %p101 = scmp.eq.s32.totalorder %s26, 0
      %p102 = por %p100, %p101
      %s103 = ssub.s32 %s27, %s39
      %s104 = ssub.s32 %s28, %s35
      %s105 = sor.u32 %s103, %s104
      %p106 = scmp.eq.s32.totalorder %s105, 0
      %s108 = sadd.s32 %s107, 1
      %s109 = scalar_select %p106, %s107, %s108
      %p112 = pneg %p106
      %p113 = scmp.eq.s32.totalorder %s20, 1
      %p114 = por %p112, %p113
      %p115 = scmp.ne.s32.totalorder %s107, %s110
      %p116 = scmp.eq.s32.totalorder %s20, 0
      %p117 = por %p115, %p116
      %p118 = scmp.ne.s32.totalorder %s107, %s110
      %p119 = scmp.eq.s32.totalorder %s25, 1
      %p120 = por %p118, %p119
      %p121 = scmp.ne.s32.totalorder %s110, %s111
      %p122 = scmp.eq.s32.totalorder %s25, 0
      %p123 = por %p121, %p122
      %p124 = scmp.ne.s32.totalorder %s110, %s111
      %p125 = scmp.eq.s32.totalorder %s26, 1
      %p126 = por %p124, %p125
      %p128 = scmp.ne.s32.totalorder %s111, %s127
      %p129 = scmp.eq.s32.totalorder %s26, 0
      %p130 = por %p128, %p129
      %s131 = ssub.s32 %s27, %s39
      %s132 = ssub.s32 %s28, %s35
      %s133 = sor.u32 %s131, %s132
      %p134 = scmp.eq.s32.totalorder %s133, 0
      %s136 = sadd.s32 %s135, 1
      %s137 = scalar_select %p134, %s135, %s136
      %p140 = pneg %p134
      %p141 = scmp.eq.s32.totalorder %s20, 1
      %p142 = por %p140, %p141
      %p143 = scmp.ne.s32.totalorder %s135, %s138
      %p144 = scmp.eq.s32.totalorder %s20, 0
      %p145 = por %p143, %p144
      %p146 = scmp.ne.s32.totalorder %s135, %s138
      %p147 = scmp.eq.s32.totalorder %s25, 1
      %p148 = por %p146, %p147
      %p149 = scmp.ne.s32.totalorder %s138, %s139
      %p150 = scmp.eq.s32.totalorder %s25, 0
      %p151 = por %p149, %p150
      %p152 = scmp.ne.s32.totalorder %s138, %s139
      %p153 = scmp.eq.s32.totalorder %s26, 1
      %p154 = por %p152, %p153
      %p156 = scmp.ne.s32.totalorder %s139, %s155
      %p157 = scmp.eq.s32.totalorder %s26, 0
      %p158 = por %p156, %p157
      %s159 = ssub.s32 %s27, %s39
      %s160 = ssub.s32 %s28, %s35
      %s161 = sor.u32 %s159, %s160
      %p162 = scmp.eq.s32.totalorder %s161, 0
      %s164 = sadd.s32 %s163, 1
      %s165 = scalar_select %p162, %s163, %s164
      %p168 = pneg %p162
      %p169 = scmp.eq.s32.totalorder %s20, 1
      %p170 = por %p168, %p169
      %p171 = scmp.ne.s32.totalorder %s163, %s166
      %p172 = scmp.eq.s32.totalorder %s20, 0
      %p173 = por %p171, %p172
      %p174 = scmp.ne.s32.totalorder %s163, %s166
      %p175 = scmp.eq.s32.totalorder %s25, 1
      %p176 = por %p174, %p175
      %p177 = scmp.ne.s32.totalorder %s166, %s167
      %p178 = scmp.eq.s32.totalorder %s25, 0
      %p179 = por %p177, %p178
      %p180 = scmp.ne.s32.totalorder %s166, %s167
      %p181 = scmp.eq.s32.totalorder %s26, 1
      %p182 = por %p180, %p181
      %p184 = scmp.ne.s32.totalorder %s167, %s183
      %p185 = scmp.eq.s32.totalorder %s26, 0
      %p186 = por %p184, %p185
      %s188 = sadd.s32 %s187, 1
      %p191 = scmp.eq.s32.totalorder %s20, 1
      %p192 = scmp.ne.s32.totalorder %s187, %s189
      %p193 = scmp.eq.s32.totalorder %s20, 0
      %p194 = por %p192, %p193
      %p195 = scmp.ne.s32.totalorder %s187, %s189
      %p196 = scmp.eq.s32.totalorder %s25, 1
      %p197 = por %p195, %p196
      %p198 = scmp.ne.s32.totalorder %s189, %s190
      %p199 = scmp.eq.s32.totalorder %s25, 0
      %p200 = por %p198, %p199
      %p201 = scmp.ne.s32.totalorder %s189, %s190
      %p202 = scmp.eq.s32.totalorder %s26, 1
      %p203 = por %p201, %p202
      %p205 = scmp.ne.s32.totalorder %s190, %s204
      %p206 = scmp.eq.s32.totalorder %s26, 0
      %p207 = por %p205, %p206
      %s208 = ssub.s32 %s27, %s39
      %p209 = scmp.eq.s32.totalorder %s208, 0
      %s211 = sadd.s32 %s210, 1
      %s212 = scalar_select %p209, %s210, %s211
      %p215 = pneg %p209
      %p216 = scmp.eq.s32.totalorder %s20, 1
      %p217 = por %p215, %p216
      %p218 = scmp.ne.s32.totalorder %s210, %s213
      %p219 = scmp.eq.s32.totalorder %s20, 0
      %p220 = por %p218, %p219
      %p221 = scmp.ne.s32.totalorder %s210, %s213
      %p222 = scmp.eq.s32.totalorder %s25, 1
      %p223 = por %p221, %p222
      %p224 = scmp.ne.s32.totalorder %s213, %s214
      %p225 = scmp.eq.s32.totalorder %s25, 0
      %p226 = por %p224, %p225
      %p227 = scmp.ne.s32.totalorder %s213, %s214
      %p228 = scmp.eq.s32.totalorder %s26, 1
      %p229 = por %p227, %p228
      %p231 = scmp.ne.s32.totalorder %s214, %s230
      %p232 = scmp.eq.s32.totalorder %s26, 0
      %p233 = por %p231, %p232
      %s234 = ssub.s32 %s27, %s39
      %s235 = ssub.s32 %s28, %s35
      %s236 = sor.u32 %s234, %s235
      %p237 = scmp.eq.s32.totalorder %s236, 0
      %s239 = sadd.s32 %s238, 1
      %s240 = scalar_select %p237, %s238, %s239
      %p243 = pneg %p237
      %p244 = scmp.eq.s32.totalorder %s20, 1
      %p245 = por %p243, %p244
      %p246 = scmp.ne.s32.totalorder %s238, %s241
      %p247 = scmp.eq.s32.totalorder %s20, 0
      %p248 = por %p246, %p247
      %p249 = scmp.ne.s32.totalorder %s238, %s241
      %p250 = scmp.eq.s32.totalorder %s25, 1
      %p251 = por %p249, %p250
      %p252 = scmp.ne.s32.totalorder %s241, %s242
      %p253 = scmp.eq.s32.totalorder %s25, 0
      %p254 = por %p252, %p253
      %p255 = scmp.ne.s32.totalorder %s241, %s242
      %p256 = scmp.eq.s32.totalorder %s26, 1
      %p257 = por %p255, %p256
      %p259 = scmp.ne.s32.totalorder %s242, %s258
      %p260 = scmp.eq.s32.totalorder %s26, 0
      %p261 = por %p259, %p260
      %p262 = scmp.le.s32.totalorder 1, %s20
      %p263 = scmp.lt.s32.totalorder %s20, 3
      %p264 = pnand %p262, %p263
      %p265 = pneg %p264
      // Predicated region
      $region9: #{tpu_custom_call.1} parent=5 // pred_check
        _
      $region10: #{tpu_custom_call.1} parent=5 // pred_check_branch
        %267 = sbr.rel (%p264) target = $region12
      $region11: #{tpu_custom_call.1} parent=5 // pred_region
        %s268 = ssub.s32 %s20, 1
        // Predicated region
        $region13: #{tpu_custom_call.1} parent=11 // pred_check
          %p269 = pneg %p53
        $region14: #{tpu_custom_call.1} parent=11 // pred_check_branch
          %271 = sbr.rel (%p269) target = $region16
        $region15: #{tpu_custom_call.1} parent=11 // pred_region
          %s273 = ssub.s32 16, 16
          %274 = vsyncadd [#allocation5], %s273
          %s276 = sshll.u32 %s0, 4
          %s277 = int_to_ptr.vmem [resolvable:$true] %s276
          %279 = dma.vmem_to_smem %s277, 16, [#allocation2], [#allocation5]
        $region16: #{tpu_custom_call.1} parent=11 // pred_fallthru
          _
        // Predicated region
        $region17: #{tpu_custom_call.1} parent=11 // pred_check
          %p280 = pneg %p74
        $region18: #{tpu_custom_call.1} parent=11 // pred_check_branch
          %282 = sbr.rel (%p280) target = $region20
        $region19: #{tpu_custom_call.1} parent=11 // pred_region
          %s284 = ssub.s32 16, 16
          %285 = vsyncadd [#allocation4], %s284
          %288 = dma.hbm_to_smem %s1, 16, [#allocation6], [#allocation4]
        $region20: #{tpu_custom_call.1} parent=11 // pred_fallthru
          _
        // Predicated region
        $region21: #{tpu_custom_call.1} parent=11 // pred_check
          %p289 = pneg %p95
        $region22: #{tpu_custom_call.1} parent=11 // pred_check_branch
          %291 = sbr.rel (%p289) target = $region24
        $region23: #{tpu_custom_call.1} parent=11 // pred_region
          %s293 = ssub.s32 16, 16
          %294 = vsyncadd [#allocation8], %s293
          %297 = dma.hbm_to_smem %s2, 16, [#allocation7], [#allocation8]
        $region24: #{tpu_custom_call.1} parent=11 // pred_fallthru
          _
        // Predicated region
        $region25: #{tpu_custom_call.1} parent=11 // pred_check
          %p298 = pneg %p200
        $region26: #{tpu_custom_call.1} parent=11 // pred_check_branch
          %300 = sbr.rel (%p298) target = $region28
        $region27: #{tpu_custom_call.1} parent=11 // pred_region
          _
        $region28: #{tpu_custom_call.1} parent=11 // pred_fallthru
          _
      $region12: #{tpu_custom_call.1} parent=5 // pred_fallthru
        _
      %p301 = scmp.lt.s32.totalorder %s20, 2
      // Predicated region
      $region29: #{tpu_custom_call.1} parent=5 // pred_check
        %p302 = pneg %p301
      $region30: #{tpu_custom_call.1} parent=5 // pred_check_branch
        %304 = sbr.rel (%p302) target = $region32
      $region31: #{tpu_custom_call.1} parent=5 // pred_region
        // Predicated region
        $region33: #{tpu_custom_call.1} parent=31 // pred_check
          %p305 = pneg %p117
        $region34: #{tpu_custom_call.1} parent=31 // pred_check_branch
          %307 = sbr.rel (%p305) target = $region36
        $region35: #{tpu_custom_call.1} parent=31 // pred_region
          %s308 = smul.u32 2, %s28
          %p309 = scmp.lt.s32.totalorder %s27, 1
          %s310 = scalar_select %p309, %s27, 1
          %p311 = scmp.lt.s32.totalorder %s308, 1
          %s312 = scalar_select %p311, %s308, 1
          %s313 = smul.addr %s310, 2
          %s314 = sadd.s32 %s312, %s313
          %s315 = smul.addr %s314, 4
          %s316 = scalar_lea.vmem %s3, %s315
          %s317 = smul.u32 2, %s28
        $region36: #{tpu_custom_call.1} parent=31 // pred_fallthru
          _
        // Predicated region
        $region37: #{tpu_custom_call.1} parent=31 // pred_check
          %p318 = pneg %p145
        $region38: #{tpu_custom_call.1} parent=31 // pred_check_branch
          %320 = sbr.rel (%p318) target = $region40
        $region39: #{tpu_custom_call.1} parent=31 // pred_region
          %s321 = smul.u32 2, %s28
          %p322 = scmp.lt.s32.totalorder %s27, 1
          %s323 = scalar_select %p322, %s27, 1
          %p324 = scmp.lt.s32.totalorder %s321, 1
          %s325 = scalar_select %p324, %s321, 1
          %s326 = smul.addr %s323, 2
          %s327 = sadd.s32 %s325, %s326
          %s328 = smul.addr %s327, 4
          %s329 = scalar_lea.vmem %s4, %s328
          %s330 = smul.u32 2, %s28
        $region40: #{tpu_custom_call.1} parent=31 // pred_fallthru
          _
        // Predicated region
        $region41: #{tpu_custom_call.1} parent=31 // pred_check
          %p331 = pneg %p173
        $region42: #{tpu_custom_call.1} parent=31 // pred_check_branch
          %333 = sbr.rel (%p331) target = $region44
        $region43: #{tpu_custom_call.1} parent=31 // pred_region
          %s334 = smul.u32 2, %s28
          %p335 = scmp.lt.s32.totalorder %s27, 1
          %s336 = scalar_select %p335, %s27, 1
          %p337 = scmp.lt.s32.totalorder %s334, 1
          %s338 = scalar_select %p337, %s334, 1
          %s339 = smul.addr %s336, 2
          %s340 = sadd.s32 %s338, %s339
          %s341 = smul.addr %s340, 4
          %s342 = scalar_lea.vmem %s5, %s341
          %s343 = smul.u32 2, %s28
        $region44: #{tpu_custom_call.1} parent=31 // pred_fallthru
          _
        // Predicated region
        $region45: #{tpu_custom_call.1} parent=31 // pred_check
          %p344 = pneg %p220
        $region46: #{tpu_custom_call.1} parent=31 // pred_check_branch
          %346 = sbr.rel (%p344) target = $region48
        $region47: #{tpu_custom_call.1} parent=31 // pred_region
          %p347 = scmp.lt.s32.totalorder %s27, 1
          %s348 = scalar_select %p347, %s27, 1
          %s349 = smul.addr %s348, 4
          %s350 = scalar_lea.vmem %s7, %s349
        $region48: #{tpu_custom_call.1} parent=31 // pred_fallthru
          _
      $region32: #{tpu_custom_call.1} parent=5 // pred_fallthru
        _
      %p351 = scmp.le.s32.totalorder 1, %s20
      %p352 = scmp.lt.s32.totalorder %s20, 3
      %p353 = pnand %p351, %p352
      %p354 = pneg %p353
      // Predicated region
      $region49: #{tpu_custom_call.1} parent=5 // pred_check
        _
      $region50: #{tpu_custom_call.1} parent=5 // pred_check_branch
        %356 = sbr.rel (%p353) target = $region52
      $region51: #{tpu_custom_call.1} parent=5 // pred_region
        %s357 = ssub.s32 %s20, 1
        // Predicated region
        $region53: #{tpu_custom_call.1} parent=51 // pred_check
          %p358 = pneg %p53
        $region54: #{tpu_custom_call.1} parent=51 // pred_check_branch
          %360 = sbr.rel (%p358) target = $region56
        $region55: #{tpu_custom_call.1} parent=51 // pred_region
          %361 = dma.done [#allocation5], 16
        $region56: #{tpu_custom_call.1} parent=51 // pred_fallthru
          _
        // Predicated region
        $region57: #{tpu_custom_call.1} parent=51 // pred_check
          %p362 = pneg %p74
        $region58: #{tpu_custom_call.1} parent=51 // pred_check_branch
          %364 = sbr.rel (%p362) target = $region60
        $region59: #{tpu_custom_call.1} parent=51 // pred_region
          %365 = dma.done [#allocation4], 16
        $region60: #{tpu_custom_call.1} parent=51 // pred_fallthru
          _
        // Predicated region
        $region61: #{tpu_custom_call.1} parent=51 // pred_check
          %p366 = pneg %p95
        $region62: #{tpu_custom_call.1} parent=51 // pred_check_branch
          %368 = sbr.rel (%p366) target = $region64
        $region63: #{tpu_custom_call.1} parent=51 // pred_region
          %369 = dma.done [#allocation8], 16
        $region64: #{tpu_custom_call.1} parent=51 // pred_fallthru
          _
        %370 = sfence
        %p371 = pneg %p53
        %p372 = pneg %p50
        %p373 = pneg %p74
        %p374 = pneg %p71
        %p375 = pneg %p95
        %p376 = pneg %p92
        %s377 = smul.u32 2, %s30
        %p378 = scmp.lt.s32.totalorder %s29, 1
        %s379 = scalar_select %p378, %s29, 1
        %p380 = scmp.lt.s32.totalorder %s377, 1
        %s381 = scalar_select %p380, %s377, 1
        %s382 = smul.addr %s379, 2
        %s383 = sadd.s32 %s381, %s382
        %s384 = smul.addr %s383, 4
        %s385 = scalar_lea.vmem %s3, %s384
        %p386 = pneg %p123
        %p387 = pneg %p120
        %s388 = smul.u32 2, %s30
        %p389 = scmp.lt.s32.totalorder %s29, 1
        %s390 = scalar_select %p389, %s29, 1
        %p391 = scmp.lt.s32.totalorder %s388, 1
        %s392 = scalar_select %p391, %s388, 1
        %s393 = smul.addr %s390, 2
        %s394 = sadd.s32 %s392, %s393
        %s395 = smul.addr %s394, 4
        %s396 = scalar_lea.vmem %s4, %s395
        %p397 = pneg %p151
        %p398 = pneg %p148
        %s399 = smul.u32 2, %s30
        %p400 = scmp.lt.s32.totalorder %s29, 1
        %s401 = scalar_select %p400, %s29, 1
        %p402 = scmp.lt.s32.totalorder %s399, 1
        %s403 = scalar_select %p402, %s399, 1
        %s404 = smul.addr %s401, 2
        %s405 = sadd.s32 %s403, %s404
        %s406 = smul.addr %s405, 4
        %s407 = scalar_lea.vmem %s5, %s406
        %p408 = pneg %p179
        %p409 = pneg %p176
        %p410 = pneg %p200
        %p411 = pneg %p197
        %p412 = scmp.lt.s32.totalorder %s29, 1
        %s413 = scalar_select %p412, %s29, 1
        %s414 = smul.addr %s413, 4
        %s415 = scalar_lea.vmem %s7, %s414
        %p416 = pneg %p226
        %p417 = pneg %p223
        %p418 = pneg %p254
        %p419 = pneg %p251
        %s420 = sand.u32 %s241, 1
        %s421 = scalar_lea.sflag [#allocation3], %s420
        %s422 = sand.u32 %s241, 1
        %s423 = smul.addr %s422, 8
        %s424 = scalar_lea.vmem [#allocation9], %s423
        %s425 = smul.u32 2, %s30
        %p426 = scmp.lt.s32.totalorder %s29, 1
        %s427 = scalar_select %p426, %s29, 1
        %p428 = scmp.lt.s32.totalorder %s425, 1
        %s429 = scalar_select %p428, %s425, 1
        %s430 = smul.addr %s427, 2
        %s431 = sadd.s32 %s429, %s430
        %s432 = smul.addr %s431, 4
        %s433 = scalar_lea.vmem %s3, %s432
        %s434 = smul.u32 2, %s30
        %s435 = smul.u32 2, %s30
        %p436 = scmp.lt.s32.totalorder %s29, 1
        %s437 = scalar_select %p436, %s29, 1
        %p438 = scmp.lt.s32.totalorder %s435, 1
        %s439 = scalar_select %p438, %s435, 1
        %s440 = smul.addr %s437, 2
        %s441 = sadd.s32 %s439, %s440
        %s442 = smul.addr %s441, 4
        %s443 = scalar_lea.vmem %s4, %s442
        %s444 = smul.u32 2, %s30
        %s445 = smul.u32 2, %s30
        %p446 = scmp.lt.s32.totalorder %s29, 1
        %s447 = scalar_select %p446, %s29, 1
        %p448 = scmp.lt.s32.totalorder %s445, 1
        %s449 = scalar_select %p448, %s445, 1
        %s450 = smul.addr %s447, 2
        %s451 = sadd.s32 %s449, %s450
        %s452 = smul.addr %s451, 4
        %s453 = scalar_lea.vmem %s5, %s452
        %s454 = smul.u32 2, %s30
        %p455 = scmp.lt.s32.totalorder %s29, 1
        %s456 = scalar_select %p455, %s29, 1
        %s457 = smul.addr %s456, 4
        %s458 = scalar_lea.vmem %s7, %s457
        %s459 = smul.u32 2, %s30
        %s460 = sld [smem:[#allocation2 + %s29]]
        %s461 = sld [smem:[#allocation6 + %s29]]
        %s462 = sld [smem:[#allocation7 + %s29]]
        %v463 = vld [vmem:[%s433] sm:$0xff]
        %v464 = vld [vmem:[%s443] sm:$0xff]
        %v465 = vld [vmem:[%s453] sm:$0xff]
        %v466 = vstv %s460
        %v467 = vmul.f32 %v466, %v463
        %v468 = vstv %s461
        %v469 = vmul.f32 %v468, %v464
        %v470 = vadd.f32 %v467, %v469
        %v471 = vsub.f32 %v470, %v465
        %v472 = vstv %s462
        %v473 = vmul.f32 %v472, %v471
        %v474 = vadd.f32 %v465, %v473
        %v475 = vld [vmem:[%s6] sm:$0xf]
        %477 = vset.pattern.permute.xlu0 0
        %478 = vperm.xlu0 %477, %v475
        %v479 = vpop.permute.xlu0 %478
        %v482 = vlaneseq
        %v483 = vshrl.u32 %v482, 7
        %v484 = vsub.s32 0, %v483
        %v485 = vrot.slane %v474, %v484
        %v486 = vlaneseq
        %v487 = vshrl.u32 %v486, 7
        %v488 = vsub.s32 4, %v487
        %v489 = vrot.slane %v474, %v488
        %v492 = vlaneseq
        %v493 = vshrl.u32 %v492, 7
        %v494 = vsub.s32 0, %v493
        %v495 = vrot.slane %v485, %v494
        %v496 = vlaneseq
        %v497 = vshrl.u32 %v496, 7
        %v498 = vsub.s32 0, %v497
        %v499 = vrot.slane %v489, %v498
        %v500 = vmul.f32 %v479, %v495
        %v501 = vmul.f32 %v479, %v499
        %v502 = vadd.f32 %v500, 0.0
        %v503 = vadd.f32 %v501, 0.0
        %s504 = scalar_lea.vmem %s6, 16
        %v505 = vld [vmem:[%s504] sm:$0xf]
        %507 = vset.pattern.permute.xlu0 0
        %508 = vperm.xlu0 %507, %v505
        %v509 = vpop.permute.xlu0 %508
        %v512 = vlaneseq
        %v513 = vshrl.u32 %v512, 7
        %v514 = vsub.s32 0, %v513
        %v515 = vrot.slane %v470, %v514
        %v516 = vlaneseq
        %v517 = vshrl.u32 %v516, 7
        %v518 = vsub.s32 4, %v517
        %v519 = vrot.slane %v470, %v518
        %v522 = vlaneseq
        %v523 = vshrl.u32 %v522, 7
        %v524 = vsub.s32 0, %v523
        %v525 = vrot.slane %v515, %v524
        %v526 = vlaneseq
        %v527 = vshrl.u32 %v526, 7
        %v528 = vsub.s32 0, %v527
        %v529 = vrot.slane %v519, %v528
        %v530 = vmul.f32 %v509, %v525
        %v531 = vmul.f32 %v509, %v529
        %v532 = vadd.f32 %v502, %v530
        %v533 = vadd.f32 %v503, %v531
        %s534 = scalar_lea.vmem %s6, 4
        %v535 = vld [vmem:[%s534] sm:$0xf]
        %537 = vset.pattern.permute.xlu0 0
        %538 = vperm.xlu0 %537, %v535
        %v539 = vpop.permute.xlu0 %538
        %v541 = vlaneseq
        %v542 = vshrl.u32 %v541, 7
        %v543 = vsub.s32 1, %v542
        %v544 = vrot.slane %v474, %v543
        %v545 = vlaneseq
        %v546 = vshrl.u32 %v545, 7
        %v547 = vsub.s32 5, %v546
        %v548 = vrot.slane %v474, %v547
        %v551 = vlaneseq
        %v552 = vshrl.u32 %v551, 7
        %v553 = vsub.s32 1, %v552
        %v554 = vrot.slane %v544, %v553
        %v555 = vlaneseq
        %v556 = vshrl.u32 %v555, 7
        %v557 = vsub.s32 1, %v556
        %v558 = vrot.slane %v548, %v557
        %v559 = vmul.f32 %v539, %v554
        %v560 = vmul.f32 %v539, %v558
        %v561 = vadd.f32 %v532, %v559
        %v562 = vadd.f32 %v533, %v560
        %s563 = scalar_lea.vmem %s6, 20
        %v564 = vld [vmem:[%s563] sm:$0xf]
        %566 = vset.pattern.permute.xlu0 0
        %567 = vperm.xlu0 %566, %v564
        %v568 = vpop.permute.xlu0 %567
        %v570 = vlaneseq
        %v571 = vshrl.u32 %v570, 7
        %v572 = vsub.s32 1, %v571
        %v573 = vrot.slane %v470, %v572
        %v574 = vlaneseq
        %v575 = vshrl.u32 %v574, 7
        %v576 = vsub.s32 5, %v575
        %v577 = vrot.slane %v470, %v576
        %v580 = vlaneseq
        %v581 = vshrl.u32 %v580, 7
        %v582 = vsub.s32 1, %v581
        %v583 = vrot.slane %v573, %v582
        %v584 = vlaneseq
        %v585 = vshrl.u32 %v584, 7
        %v586 = vsub.s32 1, %v585
        %v587 = vrot.slane %v577, %v586
        %v588 = vmul.f32 %v568, %v583
        %v589 = vmul.f32 %v568, %v587
        %v590 = vadd.f32 %v561, %v588
        %v591 = vadd.f32 %v562, %v589
        %s592 = scalar_lea.vmem %s6, 8
        %v593 = vld [vmem:[%s592] sm:$0xf]
        %595 = vset.pattern.permute.xlu0 0
        %596 = vperm.xlu0 %595, %v593
        %v597 = vpop.permute.xlu0 %596
        %v599 = vlaneseq
        %v600 = vshrl.u32 %v599, 7
        %v601 = vsub.s32 2, %v600
        %v602 = vrot.slane %v474, %v601
        %v603 = vlaneseq
        %v604 = vshrl.u32 %v603, 7
        %v605 = vsub.s32 6, %v604
        %v606 = vrot.slane %v474, %v605
        %v609 = vlaneseq
        %v610 = vshrl.u32 %v609, 7
        %v611 = vsub.s32 2, %v610
        %v612 = vrot.slane %v602, %v611
        %v613 = vlaneseq
        %v614 = vshrl.u32 %v613, 7
        %v615 = vsub.s32 2, %v614
        %v616 = vrot.slane %v606, %v615
        %v617 = vmul.f32 %v597, %v612
        %v618 = vmul.f32 %v597, %v616
        %v619 = vadd.f32 %v590, %v617
        %v620 = vadd.f32 %v591, %v618
        %s621 = scalar_lea.vmem %s6, 24
        %v622 = vld [vmem:[%s621] sm:$0xf]
        %624 = vset.pattern.permute.xlu0 0
        %625 = vperm.xlu0 %624, %v622
        %v626 = vpop.permute.xlu0 %625
        %v628 = vlaneseq
        %v629 = vshrl.u32 %v628, 7
        %v630 = vsub.s32 2, %v629
        %v631 = vrot.slane %v470, %v630
        %v632 = vlaneseq
        %v633 = vshrl.u32 %v632, 7
        %v634 = vsub.s32 6, %v633
        %v635 = vrot.slane %v470, %v634
        %v638 = vlaneseq
        %v639 = vshrl.u32 %v638, 7
        %v640 = vsub.s32 2, %v639
        %v641 = vrot.slane %v631, %v640
        %v642 = vlaneseq
        %v643 = vshrl.u32 %v642, 7
        %v644 = vsub.s32 2, %v643
        %v645 = vrot.slane %v635, %v644
        %v646 = vmul.f32 %v626, %v641
        %v647 = vmul.f32 %v626, %v645
        %v648 = vadd.f32 %v619, %v646
        %v649 = vadd.f32 %v620, %v647
        %s650 = scalar_lea.vmem %s6, 12
        %v651 = vld [vmem:[%s650] sm:$0xf]
        %653 = vset.pattern.permute.xlu0 0
        %654 = vperm.xlu0 %653, %v651
        %v655 = vpop.permute.xlu0 %654
        %v657 = vlaneseq
        %v658 = vshrl.u32 %v657, 7
        %v659 = vsub.s32 3, %v658
        %v660 = vrot.slane %v474, %v659
        %v661 = vlaneseq
        %v662 = vshrl.u32 %v661, 7
        %v663 = vsub.s32 7, %v662
        %v664 = vrot.slane %v474, %v663
        %v667 = vlaneseq
        %v668 = vshrl.u32 %v667, 7
        %v669 = vsub.s32 3, %v668
        %v670 = vrot.slane %v660, %v669
        %v671 = vlaneseq
        %v672 = vshrl.u32 %v671, 7
        %v673 = vsub.s32 3, %v672
        %v674 = vrot.slane %v664, %v673
        %v675 = vmul.f32 %v655, %v670
        %v676 = vmul.f32 %v655, %v674
        %v677 = vadd.f32 %v648, %v675
        %v678 = vadd.f32 %v649, %v676
        %s679 = scalar_lea.vmem %s6, 28
        %v680 = vld [vmem:[%s679] sm:$0xf]
        %682 = vset.pattern.permute.xlu0 0
        %683 = vperm.xlu0 %682, %v680
        %v684 = vpop.permute.xlu0 %683
        %v686 = vlaneseq
        %v687 = vshrl.u32 %v686, 7
        %v688 = vsub.s32 3, %v687
        %v689 = vrot.slane %v470, %v688
        %v690 = vlaneseq
        %v691 = vshrl.u32 %v690, 7
        %v692 = vsub.s32 7, %v691
        %v693 = vrot.slane %v470, %v692
        %v696 = vlaneseq
        %v697 = vshrl.u32 %v696, 7
        %v698 = vsub.s32 3, %v697
        %v699 = vrot.slane %v689, %v698
        %v700 = vlaneseq
        %v701 = vshrl.u32 %v700, 7
        %v702 = vsub.s32 3, %v701
        %v703 = vrot.slane %v693, %v702
        %v704 = vmul.f32 %v684, %v699
        %v705 = vmul.f32 %v684, %v703
        %v706 = vadd.f32 %v677, %v704
        %v707 = vadd.f32 %v678, %v705
        %v708 = vld [vmem:[%s458] sm:$0xf]
        %710 = vset.pattern.permute.xlu0 0
        %711 = vperm.xlu0 %710, %v708
        %v712 = vpop.permute.xlu0 %711
        %v714 = vadd.f32 %v706, %v712
        %v715 = vadd.f32 %v707, %v712
        %v717 = vcombine.high %v464, %v464
        %v719 = vsub.f32 %v714, %v464
        %v720 = vsub.f32 %v715, %v717
        %v721 = vmul.f32 %v719, %v719
        %v722 = vmul.f32 %v720, %v720
        %v725 = vcombine.low %v721, %v722
        %727 = vst [vmem:[%s424] sm:$0xff] %v725
        %s728 = sand.u32 %s241, 1
        %s729 = scalar_lea.sflag [#allocation3], %s728
        %s730 = sand.u32 %s241, 1
        %s731 = smul.addr %s730, 8
        %s732 = scalar_lea.vmem [#allocation9], %s731
        // Predicated region
        $region65: #{tpu_custom_call.1} parent=51 // pred_check
          %p733 = pneg %p251
        $region66: #{tpu_custom_call.1} parent=51 // pred_check_branch
          %735 = sbr.rel (%p733) target = $region68
        $region67: #{tpu_custom_call.1} parent=51 // pred_region
          %s736 = smul.u32 2, %s30
          %s738 = ssub.s32 128, 128
          %739 = vsyncadd %s729, %s738
          %s740 = smul.addr %s29, 2
          %s741 = sadd.s32 %s736, %s740
          %s742 = smul.addr %s741, 64
          %s743 = scalar_lea.hbm %s8, %s742
          %s745 = sshll.u32 %s732, 4
          %s746 = int_to_ptr.vmem [resolvable:$true] %s745
          %748 = dma.vmem_to_hbm [thread:$0]  %s746, 128, %s743, %s729
        $region68: #{tpu_custom_call.1} parent=51 // pred_fallthru
          _
      $region52: #{tpu_custom_call.1} parent=5 // pred_fallthru
        _
      %p749 = scmp.le.s32.totalorder 2, %s20
      // Predicated region
      $region69: #{tpu_custom_call.1} parent=5 // pred_check
        %p750 = pneg %p749
      $region70: #{tpu_custom_call.1} parent=5 // pred_check_branch
        %752 = sbr.rel (%p750) target = $region72
      $region71: #{tpu_custom_call.1} parent=5 // pred_region
        %s753 = ssub.s32 %s20, 2
        // Predicated region
        $region73: #{tpu_custom_call.1} parent=71 // pred_check
          %p754 = pneg %p257
        $region74: #{tpu_custom_call.1} parent=71 // pred_check_branch
          %756 = sbr.rel (%p754) target = $region76
        $region75: #{tpu_custom_call.1} parent=71 // pred_region
          %s757 = sand.u32 %s242, 1
          %s758 = scalar_lea.sflag [#allocation3], %s757
          %s759 = sand.u32 %s242, 1
          %s760 = smul.addr %s759, 8
          %s761 = scalar_lea.vmem [#allocation9], %s760
          %762 = dma.done %s758, 128
        $region76: #{tpu_custom_call.1} parent=71 // pred_fallthru
          _
      $region72: #{tpu_custom_call.1} parent=5 // pred_fallthru
        _
    $region6: #{tpu_custom_call.1} parent=1 // loop_footer
      %s24 = sadd.s32 1, %s20
    $region7: #{tpu_custom_call.1} parent=1 // loop_footer_branch
      %19 = sbr.rel target = $region3
    $region8: #{tpu_custom_call.1} parent=1 // loop_exit
      _
    %763 = vsyncpa [#allocation3], 1
    %s764 = scalar_lea.sflag [#allocation3], 1
    %765 = vsyncpa %s764, 1
    %766 = vsyncpa [#allocation4], 1
    %s767 = scalar_lea.sflag [#allocation4], 1
    %768 = vsyncpa %s767, 1
    %769 = vsyncpa [#allocation8], 1
    %770 = vsyncpa [#allocation5], 1
    %s771 = scalar_lea.sflag [#allocation5], 1
    %772 = vsyncpa %s771, 1

</llo_original>
